<compile_context>
chip_gen: v7x
topology: tpu7x:2x2x1
jax: 0.10.0
libtpu: 0.0.40
codegen_flags: <defaults>
</compile_context>

<pallas_src>
import dataclasses
import functools

import jax
import jax.numpy as jnp
from jax.experimental import pallas as pl
from jax.experimental.pallas import tpu as pltpu


def _cdiv(a, b):
    return -(-a // b)


def _round_up(x, m):
    return _cdiv(x, m) * m


@dataclasses.dataclass(frozen=True)
class GCNPlan:
    n: int
    k: int
    d: int
    n_pad: int
    k_pad: int
    d_pad: int
    tm: int
    tk: int
    emb_resident: bool
    negative_slope: float
    compute_dtype: object
    vmem_limit_bytes: int


def make_gcn_plan(n, k, d, *, negative_slope=0.5, tm=512, max_tk=1024,
                  compute_dtype=jnp.bfloat16):
    """Shape-only tiling plan, reusable across forward calls."""
    itemsize = jnp.dtype(compute_dtype).itemsize
    d_pad = _round_up(d, 128)

    # VMEM budget from the actual chip (64 MiB/TC on v7x, 128 MiB on v5e/v6e),
    # leaving headroom inside the limit for compiler scratch.
    try:
        vmem_cap = int(pltpu.get_tpu_info().vmem_capacity_bytes)
    except Exception:
        vmem_cap = 64 * 1024 * 1024  # conservative fallback (v7x size)
    vmem_limit = min(vmem_cap * 3 // 4, 100 * 1024 * 1024)
    budget = max(vmem_limit - 4 * 1024 * 1024, 8 * 1024 * 1024)

    # Row tile: multiple of 16 (bf16 sublane packing). Keep >= 2 and an even
    # number of i-blocks so both v7x TensorCores get work on the parallel axis.
    n16 = _round_up(n, 16)
    tm_eff = min(_round_up(tm, 16), n16)
    num_i = _cdiv(n16, tm_eff)
    if num_i == 1 and n16 >= 32:
        num_i = 2
    if num_i > 1 and num_i % 2 == 1:
        num_i += 1
    tm_eff = _round_up(_cdiv(n, num_i), 16)

    # Reduction tile: split K as evenly as possible into <= max_tk chunks,
    # 128-aligned (adj lane dim / embeds sublane dim) to bound zero padding.
    num_k = max(1, _cdiv(_round_up(k, 128), _round_up(max_tk, 128)))
    tk = _round_up(_cdiv(k, num_k), 128)

    # Shrink if the streaming working set (double-buffered) does not fit.
    def _fits(tm_, tk_):
        return (2 * tm_ * tk_ * itemsize          # adj tiles (2 buffers)
                + 2 * tm_ * d_pad * 4             # f32 output tiles (2 buffers)
                + 2 * tk_ * d_pad * itemsize      # streamed embeds slab
                ) <= budget

    while not _fits(tm_eff, tk) and tk > 128:
        tk = max(128, _round_up(tk // 2, 128))
    while not _fits(tm_eff, tk) and tm_eff > 16:
        tm_eff = max(16, _round_up(tm_eff // 2, 16))

    n_pad = _round_up(n, tm_eff)
    k_pad = _round_up(k, tk)

    # Keep embeds fully resident in VMEM (constant block index -> DMA'd once)
    # whenever the whole (k_pad, d_pad) slab plus the other working buffers
    # fits; the 2x accounts for Pallas' double-buffered allocation.
    emb_resident = (2 * k_pad * d_pad * itemsize
                    + 2 * tm_eff * tk * itemsize
                    + 2 * tm_eff * d_pad * 4) <= budget

    return GCNPlan(n=n, k=k, d=d, n_pad=n_pad, k_pad=k_pad, d_pad=d_pad,
                   tm=tm_eff, tk=tk, emb_resident=emb_resident,
                   negative_slope=negative_slope, compute_dtype=compute_dtype,
                   vmem_limit_bytes=int(vmem_limit))


def _gcn_kernel(adj_ref, emb_ref, out_ref, *, negative_slope, tk, emb_resident):
    # Grid = (i over output rows, k over the reduction).  The f32 output block
    # is resident across k (constant block index): write at k==0, accumulate
    # for k>0, apply LeakyReLU in place at k==last.
    k = pl.program_id(1)

    if emb_resident:
        # Whole padded embeds slab lives in VMEM; take this step's tk rows.
        off = pl.multiple_of(k * tk, tk)
        emb = emb_ref[pl.ds(off, tk), :]
    else:
        emb = emb_ref[...]

    prod = jnp.dot(adj_ref[...], emb, preferred_element_type=jnp.float32)

    @pl.when(k == 0)
    def _():
        out_ref[...] = prod          # direct write: no zero-init + add

    @pl.when(k > 0)
    def _():
        out_ref[...] += prod         # accumulate into the resident f32 tile

    @pl.when(k == pl.num_programs(1) - 1)
    def _():
        y = out_ref[...]             # fused LeakyReLU epilogue (VPU)
        out_ref[...] = jnp.where(y >= 0, y, negative_slope * y)


def prepare_adj(adj, plan):
    """Cast + zero-pad adjacency once; reuse across layers / training steps."""
    assert adj.shape == (plan.n, plan.k)
    return jnp.pad(adj.astype(plan.compute_dtype),
                   ((0, plan.n_pad - plan.n), (0, plan.k_pad - plan.k)))


def prepare_embeds(embeds, plan):
    assert embeds.shape == (plan.k, plan.d)
    return jnp.pad(embeds.astype(plan.compute_dtype),
                   ((0, plan.k_pad - plan.k), (0, plan.d_pad - plan.d)))


def gcn_apply(adj_p, emb_p, plan):
    """LeakyReLU(adj_p @ emb_p) on pre-padded operands; returns (n, d) f32."""
    grid = (plan.n_pad // plan.tm, plan.k_pad // plan.tk)
    kernel = functools.partial(_gcn_kernel,
                               negative_slope=plan.negative_slope,
                               tk=plan.tk,
                               emb_resident=plan.emb_resident)

    if plan.emb_resident:
        # Constant block index => the slab is DMA'd into VMEM exactly once.
        emb_spec = pl.BlockSpec((plan.k_pad, plan.d_pad), lambda i, k: (0, 0))
    else:
        emb_spec = pl.BlockSpec((plan.tk, plan.d_pad), lambda i, k: (k, 0))

    itemsize = jnp.dtype(plan.compute_dtype).itemsize
    num_i = plan.n_pad // plan.tm
    emb_reads = 1 if plan.emb_resident else num_i
    cost = pl.CostEstimate(
        flops=2 * plan.n_pad * plan.k_pad * plan.d_pad,
        transcendentals=0,
        bytes_accessed=(plan.n_pad * plan.k_pad * itemsize
                        + emb_reads * plan.k_pad * plan.d_pad * itemsize
                        + plan.n_pad * plan.d_pad * 4),
    )

    out = pl.pallas_call(
        kernel,
        out_shape=jax.ShapeDtypeStruct((plan.n_pad, plan.d_pad), jnp.float32),
        grid_spec=pltpu.PrefetchScalarGridSpec(
            num_scalar_prefetch=0,
            grid=grid,
            in_specs=[
                pl.BlockSpec((plan.tm, plan.tk), lambda i, k: (i, k)),  # adj
                emb_spec,                                                # embeds
            ],
            out_specs=pl.BlockSpec((plan.tm, plan.d_pad), lambda i, k: (i, 0)),
        ),
        compiler_params=pltpu.CompilerParams(
            dimension_semantics=("parallel", "arbitrary"),
            vmem_limit_bytes=plan.vmem_limit_bytes,
        ),
        cost_estimate=cost,
    )(adj_p, emb_p)

    return out[: plan.n, : plan.d]


def gcn_layer(adj, embeds, **plan_kwargs):
    """Convenience one-shot path (plans + prepares + applies)."""
    n, k = adj.shape
    k2, d = embeds.shape
    assert k == k2, "adj columns must match embeds rows"
    plan = make_gcn_plan(n, k, d, **plan_kwargs)
    return gcn_apply(prepare_adj(adj, plan), prepare_embeds(embeds, plan), plan)


if __name__ == "__main__":
    key = jax.random.PRNGKey(0)
    k_adj, k_emb = jax.random.split(key)

    N = 256  # number of graph nodes
    D = 128  # embedding dimension

    # Deterministic synthetic inputs: row-normalized random adjacency with
    # self loops, and random node embeddings (the module has no parameters).
    adj_raw = (jax.random.uniform(k_adj, (N, N), dtype=jnp.float32) < 0.1).astype(
        jnp.float32
    )
    adj_raw = adj_raw + jnp.eye(N, dtype=jnp.float32)
    adj = adj_raw / jnp.sum(adj_raw, axis=1, keepdims=True)

    embeds = jax.random.normal(k_emb, (N, D), dtype=jnp.float32)

    # Plan once; the padded bf16 adjacency is prepared once and reused across
    # forward calls (GCN uses the same adjacency every layer / step).
    plan = make_gcn_plan(N, N, D)
    adj_p = jax.block_until_ready(prepare_adj(adj, plan))
    emb_p = prepare_embeds(embeds, plan)

    out = jax.block_until_ready(gcn_apply(adj_p, emb_p, plan))

    # Convenience path should match the prepared path exactly.
    out2 = jax.block_until_ready(gcn_layer(adj, embeds))

    # Reference on identically bf16-rounded inputs (kernel computes exact
    # bf16 x bf16 products with f32 accumulation; only sum order differs).
    adj_bf = adj.astype(jnp.bfloat16).astype(jnp.float32)
    emb_bf = embeds.astype(jnp.bfloat16).astype(jnp.float32)
    ref = jnp.dot(adj_bf, emb_bf, precision=jax.lax.Precision.HIGHEST)
    ref = jnp.where(ref >= 0, ref, 0.5 * ref)

    assert out.shape == (N, D)
    assert jnp.allclose(out, ref, atol=2e-3, rtol=2e-3)
    assert jnp.allclose(out2, out, atol=1e-6, rtol=1e-6)

    print("KERNEL_OK")
</pallas_src>

<mosaic_0001>
module attributes {stable_mosaic.version = 11 : i64} {
  func.func @_gcn_kernel(%arg0: i32, %arg1: i32, %arg2: memref<128x256xbf16, #tpu.memory_space<vmem>>, %arg3: memref<256x128xbf16, #tpu.memory_space<vmem>>, %arg4: memref<128x128xf32, #tpu.memory_space<vmem>>) attributes {dimension_semantics = [#tpu.dimension_semantics<parallel>, #tpu.dimension_semantics<arbitrary>], iteration_bounds = array<i64: 2, 1>, scalar_prefetch = 0 : i64, scratch_operands = 0 : i64, tpu.core_type = #tpu.core_type<tc>, window_params = [{transform_indices = @transform_0, window_bounds = array<i64: 128, 256>}, {pipeline_mode = #tpu.pipeline_mode<synchronous>, transform_indices = @transform_1, window_bounds = array<i64: 256, 128>}, {transform_indices = @transform_2, window_bounds = array<i64: 128, 128>}]} {
    %c256_i32 = arith.constant 256 : i32
    %0 = arith.muli %arg1, %c256_i32 : i32
    %1 = tpu.assume_multiple %0, 256 : i32
    %2 = arith.index_cast %1 : i32 to index
    %c0 = arith.constant 0 : index
    %3 = vector.load %arg3[%2, %c0] : memref<256x128xbf16, #tpu.memory_space<vmem>>, vector<256x128xbf16>
    %c0_0 = arith.constant 0 : index
    %c0_1 = arith.constant 0 : index
    %4 = vector.load %arg2[%c0_0, %c0_1] : memref<128x256xbf16, #tpu.memory_space<vmem>>, vector<128x256xbf16>
    %cst = arith.constant dense<0.000000e+00> : vector<128x128xf32>
    %5 = tpu.matmul %4, %3, %cst {dimension_numbers = #tpu.dot_dimension_numbers<[1], [0], [0], [1], [0, 0, 1, 1], [], []>} : vector<128x256xbf16>, vector<256x128xbf16>, vector<128x128xf32> -> vector<128x128xf32>
    %c0_i32 = arith.constant 0 : i32
    %6 = arith.cmpi eq, %arg1, %c0_i32 : i32
    %7 = arith.extui %6 : i1 to i32
    %c0_i32_2 = arith.constant 0 : i32
    %8 = arith.cmpi ne, %7, %c0_i32_2 : i32
    scf.if %8 {
      %c0_7 = arith.constant 0 : index
      %c0_8 = arith.constant 0 : index
      %15 = vector.load %arg4[%c0_7, %c0_8] : memref<128x128xf32, #tpu.memory_space<vmem>>, vector<128x128xf32>
      tpu.vector_store %arg4[%c0_7, %c0_8], %5 {strides = array<i32>} : memref<128x128xf32, #tpu.memory_space<vmem>>, vector<128x128xf32>,
    } else {
    }
    %c0_i32_3 = arith.constant 0 : i32
    %9 = arith.cmpi sgt, %arg1, %c0_i32_3 : i32
    %10 = arith.extui %9 : i1 to i32
    %c0_i32_4 = arith.constant 0 : i32
    %11 = arith.cmpi ne, %10, %c0_i32_4 : i32
    scf.if %11 {
      %c0_7 = arith.constant 0 : index
      %c0_8 = arith.constant 0 : index
      %15 = vector.load %arg4[%c0_7, %c0_8] : memref<128x128xf32, #tpu.memory_space<vmem>>, vector<128x128xf32>
      %16 = arith.addf %15, %5 : vector<128x128xf32>
      %c0_9 = arith.constant 0 : index
      %c0_10 = arith.constant 0 : index
      %17 = vector.load %arg4[%c0_9, %c0_10] : memref<128x128xf32, #tpu.memory_space<vmem>>, vector<128x128xf32>
      tpu.vector_store %arg4[%c0_9, %c0_10], %16 {strides = array<i32>} : memref<128x128xf32, #tpu.memory_space<vmem>>, vector<128x128xf32>,
    } else {
    }
    %c0_i32_5 = arith.constant 0 : i32
    %12 = arith.cmpi eq, %arg1, %c0_i32_5 : i32
    %13 = arith.extui %12 : i1 to i32
    %c0_i32_6 = arith.constant 0 : i32
    %14 = arith.cmpi ne, %13, %c0_i32_6 : i32
    scf.if %14 {
      %c0_7 = arith.constant 0 : index
      %c0_8 = arith.constant 0 : index
      %15 = vector.load %arg4[%c0_7, %c0_8] : memref<128x128xf32, #tpu.memory_space<vmem>>, vector<128x128xf32>
      %cst_9 = arith.constant 0.000000e+00 : f32
      %16 = vector.broadcast %cst_9 : f32 to vector<128x128xf32>
      %17 = arith.cmpf oge, %15, %16 : vector<128x128xf32>
      %cst_10 = arith.constant 5.000000e-01 : f32
      %18 = vector.broadcast %cst_10 : f32 to vector<128x128xf32>
      %19 = arith.mulf %18, %15 : vector<128x128xf32>
      %20 = arith.select %17, %15, %19 : vector<128x128xi1>, vector<128x128xf32>
      %c0_11 = arith.constant 0 : index
      %c0_12 = arith.constant 0 : index
      %21 = vector.load %arg4[%c0_11, %c0_12] : memref<128x128xf32, #tpu.memory_space<vmem>>, vector<128x128xf32>
      tpu.vector_store %arg4[%c0_11, %c0_12], %20 {strides = array<i32>} : memref<128x128xf32, #tpu.memory_space<vmem>>, vector<128x128xf32>,
    } else {
    }
    return
  }
  func.func @transform_0(%arg0: i32, %arg1: i32) -> (i32, i32) {
    %c0_i32 = arith.constant 0 : i32
    return %arg0, %arg1 : i32, i32
  }
  func.func @transform_1(%arg0: i32, %arg1: i32) -> (i32, i32) {
    %c0_i32 = arith.constant 0 : i32
    %c0_i32_0 = arith.constant 0 : i32
    %c0_i32_1 = arith.constant 0 : i32
    return %c0_i32, %c0_i32_0 : i32, i32
  }
  func.func @transform_2(%arg0: i32, %arg1: i32) -> (i32, i32) {
    %c0_i32 = arith.constant 0 : i32
    %c0_i32_0 = arith.constant 0 : i32
    return %arg0, %c0_i32 : i32, i32
  }
}

</mosaic_0001>

<llo_original>
// kernel: tpu_custom_call.1
$region0: #{tpu_custom_call.1}
  #allocation0 [shape = 'u32[]', space=smem, size = 0x4, offset = 0x4, fixed_abs, tag = 'smem constant byte address 0x4 - core index']
  #allocation1 [shape = 'u32[144,128]{1,0:T(1,128)}', space=vmem, size = 0x12000, scoped, tag = 'internal scratch']
  %s0 = inlined_call_operand.hbm [shape: bf16[256,256], index: 0, kind: input, shape index: {}]
  %s1 = inlined_call_operand.hbm [shape: bf16[256,128], index: 1, kind: input, shape index: {}]
  %s2 = inlined_call_operand.hbm [shape: f32[256,128], index: 2, kind: output, shape index: {}]
  %s3 = sld [smem:[#allocation0]]
  $region61: #{tpu_custom_call.1} parent=0
    _
  %s5 = ssub.s32 1, %s3
  %s6 = scalar_select 0, %s5, %s3
  $region1: #{tpu_custom_call.1} parent=0
    #allocation2 [shape = 'u8[131072]{0}', space=vmem, size = 0x20000, scoped, tag = 'input window, operand 0']
    #allocation3 [shape = 's32[2]{0}', space=sflag, size = 0x8, scoped, tag = 'scoped memory for tpu_custom_call.1']
    #allocation4 [shape = 's32[2]{0}', space=sflag, size = 0x8, scoped, tag = 'scoped memory for tpu_custom_call.1']
    #allocation5 [shape = 'u8[65536]{0}', space=vmem, size = 0x10000, scoped, tag = 'input window, operand 1, single buffered']
    #allocation6 [shape = 's32[1]{0}', space=sflag, size = 0x4, scoped, tag = 'scoped memory for tpu_custom_call.1']
    #allocation7 [shape = 'u8[131072]{0}', space=vmem, size = 0x20000, scoped, tag = 'output window, operand 0']
    %7 = vsyncpa [#allocation3], 0
    %s8 = scalar_lea.sflag [#allocation3], 1
    %9 = vsyncpa %s8, 0
    %10 = vsyncpa [#allocation6], 0
    %11 = vsyncpa [#allocation4], 0
    %s12 = scalar_lea.sflag [#allocation4], 1
    %13 = vsyncpa %s12, 0
    loop: start=0, step=1, limit=4
    $region2: #{tpu_custom_call.1} parent=1 // loop_pre_header
      _
    $region3: #{tpu_custom_call.1} parent=1 // loop_header
      %s15 = sphi 0, %s19
      %p16 = scmp.ge.s32.totalorder %s15, 4
      %s22 = sphi 0, %s34
      %s23 = sphi 0, %s30
      %s24 = sphi 0, %s22
      %s25 = sphi 0, %s23
      %s26 = sphi 0, %s24
      %s27 = sphi 0, %s25
      %s39 = sphi 0, %s41
      %s42 = sphi 0, %s39
      %s43 = sphi 0, %s42
      %s59 = sphi 0, %s43
      %s63 = sphi 0, %s63
      %s65 = sphi 0, %s63
      %s66 = sphi 0, %s65
      %s80 = sphi 0, %s66
      %s86 = sphi 0, %s88
      %s89 = sphi 0, %s86
      %s90 = sphi 0, %s89
      %s106 = sphi 0, %s90
    $region4: #{tpu_custom_call.1} parent=1 // loop_header_branch
      %18 = sbr.rel (%p16) target = $region8
    $region5: #{tpu_custom_call.1} parent=1 // loop_body
      %s20 = ssub.s32 %s15, 1
      %s21 = ssub.s32 %s15, 2
      %s28 = sadd.s32 1, %s23
      %p29 = scmp.ge.s32.totalorder %s28, 1
      %s30 = scalar_select %p29, 0, %s28
      %s31 = sadd.s32 1, %s22
      %s32 = scalar_select %p29, %s31, %s22
      %p33 = scmp.ge.s32.totalorder %s32, 2
      %s34 = scalar_select %p33, 0, %s32
      %s35 = ssub.s32 %s22, %s34
      %s36 = ssub.s32 %s23, %s30
      %s37 = sor.u32 %s35, %s36
      %p38 = scmp.eq.s32.totalorder %s37, 0
      %s40 = sadd.s32 %s39, 1
      %s41 = scalar_select %p38, %s39, %s40
      %p44 = pneg %p38
      %p45 = scmp.eq.s32.totalorder %s15, 1
      %p46 = por %p44, %p45
      %p47 = scmp.ne.s32.totalorder %s39, %s42
      %p48 = scmp.eq.s32.totalorder %s15, 0
      %p49 = por %p47, %p48
      %p50 = scmp.ne.s32.totalorder %s39, %s42
      %p51 = scmp.eq.s32.totalorder %s20, 1
      %p52 = por %p50, %p51
      %p53 = scmp.ne.s32.totalorder %s42, %s43
      %p54 = scmp.eq.s32.totalorder %s20, 0
      %p55 = por %p53, %p54
      %p56 = scmp.ne.s32.totalorder %s42, %s43
      %p57 = scmp.eq.s32.totalorder %s21, 1
      %p58 = por %p56, %p57
      %p60 = scmp.ne.s32.totalorder %s43, %s59
      %p61 = scmp.eq.s32.totalorder %s21, 0
      %p62 = por %p60, %p61
      %s64 = sadd.s32 %s63, 1
      %p67 = scmp.eq.s32.totalorder %s15, 1
      %p68 = scmp.ne.s32.totalorder %s63, %s65
      %p69 = scmp.eq.s32.totalorder %s15, 0
      %p70 = por %p68, %p69
      %p71 = scmp.ne.s32.totalorder %s63, %s65
      %p72 = scmp.eq.s32.totalorder %s20, 1
      %p73 = por %p71, %p72
      %p74 = scmp.ne.s32.totalorder %s65, %s66
      %p75 = scmp.eq.s32.totalorder %s20, 0
      %p76 = por %p74, %p75
      %p77 = scmp.ne.s32.totalorder %s65, %s66
      %p78 = scmp.eq.s32.totalorder %s21, 1
      %p79 = por %p77, %p78
      %p81 = scmp.ne.s32.totalorder %s66, %s80
      %p82 = scmp.eq.s32.totalorder %s21, 0
      %p83 = por %p81, %p82
      %s84 = ssub.s32 %s22, %s34
      %p85 = scmp.eq.s32.totalorder %s84, 0
      %s87 = sadd.s32 %s86, 1
      %s88 = scalar_select %p85, %s86, %s87
      %p91 = pneg %p85
      %p92 = scmp.eq.s32.totalorder %s15, 1
      %p93 = por %p91, %p92
      %p94 = scmp.ne.s32.totalorder %s86, %s89
      %p95 = scmp.eq.s32.totalorder %s15, 0
      %p96 = por %p94, %p95
      %p97 = scmp.ne.s32.totalorder %s86, %s89
      %p98 = scmp.eq.s32.totalorder %s20, 1
      %p99 = por %p97, %p98
      %p100 = scmp.ne.s32.totalorder %s89, %s90
      %p101 = scmp.eq.s32.totalorder %s20, 0
      %p102 = por %p100, %p101
      %p103 = scmp.ne.s32.totalorder %s89, %s90
      %p104 = scmp.eq.s32.totalorder %s21, 1
      %p105 = por %p103, %p104
      %p107 = scmp.ne.s32.totalorder %s90, %s106
      %p108 = scmp.eq.s32.totalorder %s21, 0
      %p109 = por %p107, %p108
      %p110 = scmp.le.s32.totalorder 1, %s15
      %p111 = scmp.lt.s32.totalorder %s15, 3
      %p112 = pnand %p110, %p111
      %p113 = pneg %p112
      // Predicated region
      $region9: #{tpu_custom_call.1} parent=5 // pred_check
        _
      $region10: #{tpu_custom_call.1} parent=5 // pred_check_branch
        %115 = sbr.rel (%p112) target = $region12
      $region11: #{tpu_custom_call.1} parent=5 // pred_region
        %s116 = ssub.s32 %s15, 1
        // Predicated region
        $region13: #{tpu_custom_call.1} parent=11 // pred_check
          %p117 = pneg %p76
        $region14: #{tpu_custom_call.1} parent=11 // pred_check_branch
          %119 = sbr.rel (%p117) target = $region16
        $region15: #{tpu_custom_call.1} parent=11 // pred_region
          %s121 = ssub.s32 2048, 2048
          %122 = vsyncadd [#allocation6], %s121
          %s123 = sshll.u32 [#allocation5], 4
          %s124 = int_to_ptr.vmem [resolvable:$true] %s123
          %129 = dma.hbm_to_vmem [thread:$0]  %s1, 2048, %s124, [#allocation6], 64, 64, 4
        $region16: #{tpu_custom_call.1} parent=11 // pred_fallthru
          _
      $region12: #{tpu_custom_call.1} parent=5 // pred_fallthru
        _
      %p130 = scmp.lt.s32.totalorder %s15, 2
      // Predicated region
      $region17: #{tpu_custom_call.1} parent=5 // pred_check
        %p131 = pneg %p130
      $region18: #{tpu_custom_call.1} parent=5 // pred_check_branch
        %133 = sbr.rel (%p131) target = $region20
      $region19: #{tpu_custom_call.1} parent=5 // pred_region
        // Predicated region
        $region21: #{tpu_custom_call.1} parent=19 // pred_check
          %p134 = pneg %p49
        $region22: #{tpu_custom_call.1} parent=19 // pred_check_branch
          %136 = sbr.rel (%p134) target = $region24
        $region23: #{tpu_custom_call.1} parent=19 // pred_region
          %s137 = sand.u32 %s39, 1
          %s138 = scalar_lea.sflag [#allocation3], %s137
          %s139 = sand.u32 %s39, 1
          %s140 = smul.addr %s139, 128
          %s141 = scalar_lea.vmem [#allocation2], %s140
          %s142 = smul.u32 16, %s22
          %s143 = smul.u32 2, %s23
          %s145 = ssub.s32 2048, 2048
          %146 = vsyncadd %s138, %s145
          %s147 = smul.addr %s142, 2
          %s148 = sadd.s32 %s143, %s147
          %s149 = smul.addr %s148, 64
          %s150 = scalar_lea.hbm %s0, %s149
          %s151 = sshll.u32 %s141, 4
          %s152 = int_to_ptr.vmem [resolvable:$true] %s151
          %157 = dma.hbm_to_vmem [thread:$0]  %s150, 2048, %s152, %s138, 128, 128, 8
        $region24: #{tpu_custom_call.1} parent=19 // pred_fallthru
          _
      $region20: #{tpu_custom_call.1} parent=5 // pred_fallthru
        _
      %p158 = scmp.le.s32.totalorder 1, %s15
      %p159 = scmp.lt.s32.totalorder %s15, 3
      %p160 = pnand %p158, %p159
      %p161 = pneg %p160
      // Predicated region
      $region25: #{tpu_custom_call.1} parent=5 // pred_check
        _
      $region26: #{tpu_custom_call.1} parent=5 // pred_check_branch
        %163 = sbr.rel (%p160) target = $region28
      $region27: #{tpu_custom_call.1} parent=5 // pred_region
        %s164 = ssub.s32 %s15, 1
        %s165 = sand.u32 %s42, 1
        %s166 = scalar_lea.sflag [#allocation3], %s165
        %s167 = sand.u32 %s42, 1
        %s168 = smul.addr %s167, 128
        %s169 = scalar_lea.vmem [#allocation2], %s168
        // Predicated region
        $region29: #{tpu_custom_call.1} parent=27 // pred_check
          %p170 = pneg %p55
        $region30: #{tpu_custom_call.1} parent=27 // pred_check_branch
          %172 = sbr.rel (%p170) target = $region32
        $region31: #{tpu_custom_call.1} parent=27 // pred_region
          %173 = dma.done %s166, 2048
        $region32: #{tpu_custom_call.1} parent=27 // pred_fallthru
          _
        // Predicated region
        $region33: #{tpu_custom_call.1} parent=27 // pred_check
          %p174 = pneg %p76
        $region34: #{tpu_custom_call.1} parent=27 // pred_check_branch
          %176 = sbr.rel (%p174) target = $region36
        $region35: #{tpu_custom_call.1} parent=27 // pred_region
          %177 = dma.done [#allocation6], 2048
        $region36: #{tpu_custom_call.1} parent=27 // pred_fallthru
          _
        %s178 = sand.u32 %s42, 1
        %s179 = scalar_lea.sflag [#allocation3], %s178
        %s180 = sand.u32 %s42, 1
        %s181 = smul.addr %s180, 128
        %s182 = scalar_lea.vmem [#allocation2], %s181
        %p183 = pneg %p55
        %p184 = pneg %p52
        %p185 = pneg %p76
        %p186 = pneg %p73
        %p187 = pneg %p102
        %p188 = pneg %p99
        %s189 = sand.u32 %s89, 1
        %s190 = scalar_lea.sflag [#allocation4], %s189
        %s191 = sand.u32 %s89, 1
        %s192 = smul.addr %s191, 128
        %s193 = scalar_lea.vmem [#allocation7], %s192
        %s194 = smul.u32 16, %s24
        %s195 = smul.u32 2, %s25
        %s196 = smul.u32 16, %s24
        %s198 = smul.u32 %s25, 256
        %s199 = sshra.s32 %s198, 3
        %s200 = sand.u32 %s198, 7
        %s201 = smul.addr %s199, 4
        %s202 = scalar_lea.vmem [#allocation5], %s201
        %v203 = vld [vmem:[%s202] sm:$0xf]
        %v204 = vld [vmem:[%s202 + $0x4] sm:$0xf]
        %v205 = vld [vmem:[%s202 + $0x8] sm:$0xf]
        %v206 = vld [vmem:[%s202 + $0xc] sm:$0xf]
        %v207 = vld [vmem:[%s202 + $0x10] sm:$0xf]
        %v208 = vld [vmem:[%s202 + $0x14] sm:$0xf]
        %v209 = vld [vmem:[%s202 + $0x18] sm:$0xf]
        %v210 = vld [vmem:[%s202 + $0x1c] sm:$0xf]
        %v211 = vld [vmem:[%s202 + $0x20] sm:$0xf]
        %v212 = vld [vmem:[%s202 + $0x24] sm:$0xf]
        %v213 = vld [vmem:[%s202 + $0x28] sm:$0xf]
        %v214 = vld [vmem:[%s202 + $0x2c] sm:$0xf]
        %v215 = vld [vmem:[%s202 + $0x30] sm:$0xf]
        %v216 = vld [vmem:[%s202 + $0x34] sm:$0xf]
        %v217 = vld [vmem:[%s202 + $0x38] sm:$0xf]
        %v218 = vld [vmem:[%s202 + $0x3c] sm:$0xf]
        %v219 = vld [vmem:[%s202 + $0x40] sm:$0xf]
        %v220 = vld [vmem:[%s202 + $0x44] sm:$0xf]
        %v221 = vld [vmem:[%s202 + $0x48] sm:$0xf]
        %v222 = vld [vmem:[%s202 + $0x4c] sm:$0xf]
        %v223 = vld [vmem:[%s202 + $0x50] sm:$0xf]
        %v224 = vld [vmem:[%s202 + $0x54] sm:$0xf]
        %v225 = vld [vmem:[%s202 + $0x58] sm:$0xf]
        %v226 = vld [vmem:[%s202 + $0x5c] sm:$0xf]
        %v227 = vld [vmem:[%s202 + $0x60] sm:$0xf]
        %v228 = vld [vmem:[%s202 + $0x64] sm:$0xf]
        %v229 = vld [vmem:[%s202 + $0x68] sm:$0xf]
        %v230 = vld [vmem:[%s202 + $0x6c] sm:$0xf]
        %v231 = vld [vmem:[%s202 + $0x70] sm:$0xf]
        %v232 = vld [vmem:[%s202 + $0x74] sm:$0xf]
        %v233 = vld [vmem:[%s202 + $0x78] sm:$0xf]
        %v234 = vld [vmem:[%s202 + $0x7c] sm:$0xf]
        %v235 = vld [vmem:[%s169] sm:$0xff]
        %v236 = vld [vmem:[%s169 + $0x8] sm:$0xff]
        %v237 = vld [vmem:[%s169 + $0x10] sm:$0xff]
        %v238 = vld [vmem:[%s169 + $0x18] sm:$0xff]
        %v239 = vld [vmem:[%s169 + $0x20] sm:$0xff]
        %v240 = vld [vmem:[%s169 + $0x28] sm:$0xff]
        %v241 = vld [vmem:[%s169 + $0x30] sm:$0xff]
        %v242 = vld [vmem:[%s169 + $0x38] sm:$0xff]
        %v243 = vld [vmem:[%s169 + $0x40] sm:$0xff]
        %v244 = vld [vmem:[%s169 + $0x48] sm:$0xff]
        %v245 = vld [vmem:[%s169 + $0x50] sm:$0xff]
        %v246 = vld [vmem:[%s169 + $0x58] sm:$0xff]
        %v247 = vld [vmem:[%s169 + $0x60] sm:$0xff]
        %v248 = vld [vmem:[%s169 + $0x68] sm:$0xff]
        %v249 = vld [vmem:[%s169 + $0x70] sm:$0xff]
        %v250 = vld [vmem:[%s169 + $0x78] sm:$0xff]
        %v267 = vunpack.c.l.b16 %v235
        %v268 = vunpack.c.h.b16 %v235
        %v269 = vunpack.c.l.b16 %v236
        %v270 = vunpack.c.h.b16 %v236
        %v271 = vunpack.c.l.b16 %v237
        %v272 = vunpack.c.h.b16 %v237
        %v273 = vunpack.c.l.b16 %v238
        %v274 = vunpack.c.h.b16 %v238
        %v275 = vunpack.c.l.b16 %v239
        %v276 = vunpack.c.h.b16 %v239
        %v277 = vunpack.c.l.b16 %v240
        %v278 = vunpack.c.h.b16 %v240
        %v279 = vunpack.c.l.b16 %v241
        %v280 = vunpack.c.h.b16 %v241
        %v281 = vunpack.c.l.b16 %v242
        %v282 = vunpack.c.h.b16 %v242
        %v283 = vunpack.c.l.b16 %v243
        %v284 = vunpack.c.h.b16 %v243
        %v285 = vunpack.c.l.b16 %v244
        %v286 = vunpack.c.h.b16 %v244
        %v287 = vunpack.c.l.b16 %v245
        %v288 = vunpack.c.h.b16 %v245
        %v289 = vunpack.c.l.b16 %v246
        %v290 = vunpack.c.h.b16 %v246
        %v291 = vunpack.c.l.b16 %v247
        %v292 = vunpack.c.h.b16 %v247
        %v293 = vunpack.c.l.b16 %v248
        %v294 = vunpack.c.h.b16 %v248
        %v295 = vunpack.c.l.b16 %v249
        %v296 = vunpack.c.h.b16 %v249
        %v297 = vunpack.c.l.b16 %v250
        %v298 = vunpack.c.h.b16 %v250
        %v299 = vpack.c.b16 %v269, %v267
        %v300 = vpack.c.b16 %v270, %v268
        %v301 = vpack.c.b16 %v273, %v271
        %v302 = vpack.c.b16 %v274, %v272
        %v303 = vpack.c.b16 %v277, %v275
        %v304 = vpack.c.b16 %v278, %v276
        %v305 = vpack.c.b16 %v281, %v279
        %v306 = vpack.c.b16 %v282, %v280
        %v307 = vpack.c.b16 %v285, %v283
        %v308 = vpack.c.b16 %v286, %v284
        %v309 = vpack.c.b16 %v289, %v287
        %v310 = vpack.c.b16 %v290, %v288
        %v311 = vpack.c.b16 %v293, %v291
        %v312 = vpack.c.b16 %v294, %v292
        %v313 = vpack.c.b16 %v297, %v295
        %v314 = vpack.c.b16 %v298, %v296
        %v363 = vunpack.c.l.b16 %v203
        %v364 = vunpack.c.l.b16 %v204
        %v365 = vunpack.c.l.b16 %v205
        %v366 = vunpack.c.l.b16 %v206
        %v367 = vunpack.c.l.b16 %v207
        %v368 = vunpack.c.l.b16 %v208
        %v369 = vunpack.c.l.b16 %v209
        %v370 = vunpack.c.l.b16 %v210
        %v371 = vunpack.c.l.b16 %v211
        %v372 = vunpack.c.l.b16 %v212
        %v373 = vunpack.c.l.b16 %v213
        %v374 = vunpack.c.l.b16 %v214
        %v375 = vunpack.c.l.b16 %v215
        %v376 = vunpack.c.l.b16 %v216
        %v377 = vunpack.c.l.b16 %v217
        %v378 = vunpack.c.l.b16 %v218
        %v379 = vunpack.c.l.b16 %v219
        %v380 = vunpack.c.l.b16 %v220
        %v381 = vunpack.c.l.b16 %v221
        %v382 = vunpack.c.l.b16 %v222
        %v383 = vunpack.c.l.b16 %v223
        %v384 = vunpack.c.l.b16 %v224
        %v385 = vunpack.c.l.b16 %v225
        %v386 = vunpack.c.l.b16 %v226
        %v387 = vunpack.c.l.b16 %v227
        %v388 = vunpack.c.l.b16 %v228
        %v389 = vunpack.c.l.b16 %v229
        %v390 = vunpack.c.l.b16 %v230
        %v391 = vunpack.c.l.b16 %v231
        %v392 = vunpack.c.l.b16 %v232
        %v393 = vunpack.c.l.b16 %v233
        %v394 = vunpack.c.l.b16 %v234
        %v395 = vpack.c.b16 %v364, %v363
        %v396 = vpack.c.b16 %v366, %v365
        %v397 = vpack.c.b16 %v368, %v367
        %v398 = vpack.c.b16 %v370, %v369
        %v399 = vpack.c.b16 %v372, %v371
        %v400 = vpack.c.b16 %v374, %v373
        %v401 = vpack.c.b16 %v376, %v375
        %v402 = vpack.c.b16 %v378, %v377
        %v403 = vpack.c.b16 %v380, %v379
        %v404 = vpack.c.b16 %v382, %v381
        %v405 = vpack.c.b16 %v384, %v383
        %v406 = vpack.c.b16 %v386, %v385
        %v407 = vpack.c.b16 %v388, %v387
        %v408 = vpack.c.b16 %v390, %v389
        %v409 = vpack.c.b16 %v392, %v391
        %v410 = vpack.c.b16 %v394, %v393
        %427 = vmatprep.subr.bf16.mxu0 0
        %428 = vmatpush1.bf16.msra.mxu0 %v395
        %429 = vmatprep.subr.bf16.mxu0 0
        %430 = vmatpush1.bf16.msra.mxu0 %v396
        %431 = vmatprep.subr.bf16.mxu0 0
        %432 = vmatpush1.bf16.msra.mxu0 %v397
        %433 = vmatprep.subr.bf16.mxu0 0
        %434 = vmatpush1.bf16.msra.mxu0 %v398
        %435 = vmatprep.subr.bf16.mxu0 0
        %436 = vmatpush1.bf16.msra.mxu0 %v399
        %437 = vmatprep.subr.bf16.mxu0 0
        %438 = vmatpush1.bf16.msra.mxu0 %v400
        %439 = vmatprep.subr.bf16.mxu0 0
        %440 = vmatpush1.bf16.msra.mxu0 %v401
        %441 = vmatprep.subr.bf16.mxu0 0
        %442 = vmatpush1.bf16.msra.mxu0 %v402
        %443 = vmatprep.subr.bf16.mxu0 0
        %444 = vmatpush1.bf16.msra.mxu0 %v403
        %445 = vmatprep.subr.bf16.mxu0 0
        %446 = vmatpush1.bf16.msra.mxu0 %v404
        %447 = vmatprep.subr.bf16.mxu0 0
        %448 = vmatpush1.bf16.msra.mxu0 %v405
        %449 = vmatprep.subr.bf16.mxu0 0
        %450 = vmatpush1.bf16.msra.mxu0 %v406
        %451 = vmatprep.subr.bf16.mxu0 0
        %452 = vmatpush1.bf16.msra.mxu0 %v407
        %453 = vmatprep.subr.bf16.mxu0 0
        %454 = vmatpush1.bf16.msra.mxu0 %v408
        %455 = vmatprep.subr.bf16.mxu0 0
        %456 = vmatpush1.bf16.msra.mxu0 %v409
        %457 = vmatprep.subr.bf16.mxu0 0
        %458 = vmatpush1.bf16.msra.mxu0 %v410
        %459 = vmatprep.mubr.bf16.mxu0 %v300
        %460 = vmatmul.mubr.bf16.gmra.mrb[0].mxu0 %v299
        %v461 = vpop.f32.mrb[0].mxu0
        %v462 = vadd.f32 0.0, %v461
        %v463 = vpop.f32.mrb[0].mxu0
        %v464 = vpop.f32.mrb[0].mxu0
        %v465 = vadd.f32 0.0, %v464
        %v466 = vpop.f32.mrb[0].mxu0
        %467 = vmatprep.mubr.bf16.mxu0 %v302
        %468 = vmatmul.mubr.bf16.gmra.mrb[0].mxu0 %v301
        %v469 = vpop.f32.mrb[0].mxu0
        %v470 = vadd.f32 0.0, %v469
        %v471 = vpop.f32.mrb[0].mxu0
        %v472 = vpop.f32.mrb[0].mxu0
        %v473 = vadd.f32 0.0, %v472
        %v474 = vpop.f32.mrb[0].mxu0
        %475 = vmatprep.mubr.bf16.mxu0 %v304
        %476 = vmatmul.mubr.bf16.gmra.mrb[0].mxu0 %v303
        %v477 = vpop.f32.mrb[0].mxu0
        %v478 = vadd.f32 0.0, %v477
        %v479 = vpop.f32.mrb[0].mxu0
        %v480 = vpop.f32.mrb[0].mxu0
        %v481 = vadd.f32 0.0, %v480
        %v482 = vpop.f32.mrb[0].mxu0
        %483 = vmatprep.mubr.bf16.mxu0 %v306
        %484 = vmatmul.mubr.bf16.gmra.mrb[0].mxu0 %v305
        %v485 = vpop.f32.mrb[0].mxu0
        %v486 = vadd.f32 0.0, %v485
        %v487 = vpop.f32.mrb[0].mxu0
        %v488 = vpop.f32.mrb[0].mxu0
        %v489 = vadd.f32 0.0, %v488
        %v490 = vpop.f32.mrb[0].mxu0
        %491 = vmatprep.mubr.bf16.mxu0 %v308
        %492 = vmatmul.mubr.bf16.gmra.mrb[0].mxu0 %v307
        %v493 = vpop.f32.mrb[0].mxu0
        %v494 = vadd.f32 0.0, %v493
        %v495 = vpop.f32.mrb[0].mxu0
        %v496 = vpop.f32.mrb[0].mxu0
        %v497 = vadd.f32 0.0, %v496
        %v498 = vpop.f32.mrb[0].mxu0
        %499 = vmatprep.mubr.bf16.mxu0 %v310
        %500 = vmatmul.mubr.bf16.gmra.mrb[0].mxu0 %v309
        %v501 = vpop.f32.mrb[0].mxu0
        %v502 = vadd.f32 0.0, %v501
        %v503 = vpop.f32.mrb[0].mxu0
        %v504 = vpop.f32.mrb[0].mxu0
        %v505 = vadd.f32 0.0, %v504
        %v506 = vpop.f32.mrb[0].mxu0
        %507 = vmatprep.mubr.bf16.mxu0 %v312
        %508 = vmatmul.mubr.bf16.gmra.mrb[0].mxu0 %v311
        %v509 = vpop.f32.mrb[0].mxu0
        %v510 = vadd.f32 0.0, %v509
        %v511 = vpop.f32.mrb[0].mxu0
        %v512 = vpop.f32.mrb[0].mxu0
        %v513 = vadd.f32 0.0, %v512
        %v514 = vpop.f32.mrb[0].mxu0
        %515 = vmatprep.mubr.bf16.mxu0 %v314
        %516 = vmatmul.mubr.bf16.gmra.mrb[0].mxu0 %v313
        %v517 = vpop.f32.mrb[0].mxu0
        %v518 = vadd.f32 0.0, %v517
        %v519 = vpop.f32.mrb[0].mxu0
        %v520 = vpop.f32.mrb[0].mxu0
        %v521 = vadd.f32 0.0, %v520
        %v522 = vpop.f32.mrb[0].mxu0
        %523 = vdwg.mxu0
        %p524 = scmp.eq.s32.totalorder %s25, 0
        // Predicated region
        $region37: #{tpu_custom_call.1} parent=27 // pred_check
          %p525 = pneg %p524
        $region38: #{tpu_custom_call.1} parent=27 // pred_check_branch
          %527 = sbr.rel (%p525) target = $region40
        $region39: #{tpu_custom_call.1} parent=27 // pred_region
          %528 = vst [vmem:[%s193] sm:$0xff] %v462
          %529 = vst [vmem:[%s193 + $0x8] sm:$0xff] %v465
          %530 = vst [vmem:[%s193 + $0x10] sm:$0xff] %v470
          %531 = vst [vmem:[%s193 + $0x18] sm:$0xff] %v473
          %532 = vst [vmem:[%s193 + $0x20] sm:$0xff] %v478
          %533 = vst [vmem:[%s193 + $0x28] sm:$0xff] %v481
          %534 = vst [vmem:[%s193 + $0x30] sm:$0xff] %v486
          %535 = vst [vmem:[%s193 + $0x38] sm:$0xff] %v489
          %536 = vst [vmem:[%s193 + $0x40] sm:$0xff] %v494
          %537 = vst [vmem:[%s193 + $0x48] sm:$0xff] %v497
          %538 = vst [vmem:[%s193 + $0x50] sm:$0xff] %v502
          %539 = vst [vmem:[%s193 + $0x58] sm:$0xff] %v505
          %540 = vst [vmem:[%s193 + $0x60] sm:$0xff] %v510
          %541 = vst [vmem:[%s193 + $0x68] sm:$0xff] %v513
          %542 = vst [vmem:[%s193 + $0x70] sm:$0xff] %v518
          %543 = vst [vmem:[%s193 + $0x78] sm:$0xff] %v521
        $region40: #{tpu_custom_call.1} parent=27 // pred_fallthru
          _
        %p544 = scmp.gt.s32.totalorder %s25, 0
        // Predicated region
        $region41: #{tpu_custom_call.1} parent=27 // pred_check
          %p545 = pneg %p544
        $region42: #{tpu_custom_call.1} parent=27 // pred_check_branch
          %547 = sbr.rel (%p545) target = $region44
        $region43: #{tpu_custom_call.1} parent=27 // pred_region
          %v548 = vld [vmem:[%s193] sm:$0xff]
          %v549 = vld [vmem:[%s193 + $0x8] sm:$0xff]
          %v550 = vld [vmem:[%s193 + $0x10] sm:$0xff]
          %v551 = vld [vmem:[%s193 + $0x18] sm:$0xff]
          %v552 = vld [vmem:[%s193 + $0x20] sm:$0xff]
          %v553 = vld [vmem:[%s193 + $0x28] sm:$0xff]
          %v554 = vld [vmem:[%s193 + $0x30] sm:$0xff]
          %v555 = vld [vmem:[%s193 + $0x38] sm:$0xff]
          %v556 = vld [vmem:[%s193 + $0x40] sm:$0xff]
          %v557 = vld [vmem:[%s193 + $0x48] sm:$0xff]
          %v558 = vld [vmem:[%s193 + $0x50] sm:$0xff]
          %v559 = vld [vmem:[%s193 + $0x58] sm:$0xff]
          %v560 = vld [vmem:[%s193 + $0x60] sm:$0xff]
          %v561 = vld [vmem:[%s193 + $0x68] sm:$0xff]
          %v562 = vld [vmem:[%s193 + $0x70] sm:$0xff]
          %v563 = vld [vmem:[%s193 + $0x78] sm:$0xff]
          %v564 = vadd.f32 %v548, %v462
          %v565 = vadd.f32 %v549, %v465
          %v566 = vadd.f32 %v550, %v470
          %v567 = vadd.f32 %v551, %v473
          %v568 = vadd.f32 %v552, %v478
          %v569 = vadd.f32 %v553, %v481
          %v570 = vadd.f32 %v554, %v486
          %v571 = vadd.f32 %v555, %v489
          %v572 = vadd.f32 %v556, %v494
          %v573 = vadd.f32 %v557, %v497
          %v574 = vadd.f32 %v558, %v502
          %v575 = vadd.f32 %v559, %v505
          %v576 = vadd.f32 %v560, %v510
          %v577 = vadd.f32 %v561, %v513
          %v578 = vadd.f32 %v562, %v518
          %v579 = vadd.f32 %v563, %v521
          %580 = vst [vmem:[%s193] sm:$0xff] %v564
          %581 = vst [vmem:[%s193 + $0x8] sm:$0xff] %v565
          %582 = vst [vmem:[%s193 + $0x10] sm:$0xff] %v566
          %583 = vst [vmem:[%s193 + $0x18] sm:$0xff] %v567
          %584 = vst [vmem:[%s193 + $0x20] sm:$0xff] %v568
          %585 = vst [vmem:[%s193 + $0x28] sm:$0xff] %v569
          %586 = vst [vmem:[%s193 + $0x30] sm:$0xff] %v570
          %587 = vst [vmem:[%s193 + $0x38] sm:$0xff] %v571
          %588 = vst [vmem:[%s193 + $0x40] sm:$0xff] %v572
          %589 = vst [vmem:[%s193 + $0x48] sm:$0xff] %v573
          %590 = vst [vmem:[%s193 + $0x50] sm:$0xff] %v574
          %591 = vst [vmem:[%s193 + $0x58] sm:$0xff] %v575
          %592 = vst [vmem:[%s193 + $0x60] sm:$0xff] %v576
          %593 = vst [vmem:[%s193 + $0x68] sm:$0xff] %v577
          %594 = vst [vmem:[%s193 + $0x70] sm:$0xff] %v578
          %595 = vst [vmem:[%s193 + $0x78] sm:$0xff] %v579
        $region44: #{tpu_custom_call.1} parent=27 // pred_fallthru
          _
        // Predicated region
        $region45: #{tpu_custom_call.1} parent=27 // pred_check
          %p596 = pneg %p524
        $region46: #{tpu_custom_call.1} parent=27 // pred_check_branch
          %598 = sbr.rel (%p596) target = $region48
        $region47: #{tpu_custom_call.1} parent=27 // pred_region
          %v599 = vld [vmem:[%s193] sm:$0xff]
          %v600 = vld [vmem:[%s193 + $0x8] sm:$0xff]
          %v601 = vld [vmem:[%s193 + $0x10] sm:$0xff]
          %v602 = vld [vmem:[%s193 + $0x18] sm:$0xff]
          %v603 = vld [vmem:[%s193 + $0x20] sm:$0xff]
          %v604 = vld [vmem:[%s193 + $0x28] sm:$0xff]
          %v605 = vld [vmem:[%s193 + $0x30] sm:$0xff]
          %v606 = vld [vmem:[%s193 + $0x38] sm:$0xff]
          %v607 = vld [vmem:[%s193 + $0x40] sm:$0xff]
          %v608 = vld [vmem:[%s193 + $0x48] sm:$0xff]
          %v609 = vld [vmem:[%s193 + $0x50] sm:$0xff]
          %v610 = vld [vmem:[%s193 + $0x58] sm:$0xff]
          %v611 = vld [vmem:[%s193 + $0x60] sm:$0xff]
          %v612 = vld [vmem:[%s193 + $0x68] sm:$0xff]
          %v613 = vld [vmem:[%s193 + $0x70] sm:$0xff]
          %v614 = vld [vmem:[%s193 + $0x78] sm:$0xff]
          %vm615 = vcmp.ge.f32.partialorder %v599, 0.0
          %vm616 = vcmp.ge.f32.partialorder %v600, 0.0
          %vm617 = vcmp.ge.f32.partialorder %v601, 0.0
          %vm618 = vcmp.ge.f32.partialorder %v602, 0.0
          %vm619 = vcmp.ge.f32.partialorder %v603, 0.0
          %vm620 = vcmp.ge.f32.partialorder %v604, 0.0
          %vm621 = vcmp.ge.f32.partialorder %v605, 0.0
          %vm622 = vcmp.ge.f32.partialorder %v606, 0.0
          %vm623 = vcmp.ge.f32.partialorder %v607, 0.0
          %vm624 = vcmp.ge.f32.partialorder %v608, 0.0
          %vm625 = vcmp.ge.f32.partialorder %v609, 0.0
          %vm626 = vcmp.ge.f32.partialorder %v610, 0.0
          %vm627 = vcmp.ge.f32.partialorder %v611, 0.0
          %vm628 = vcmp.ge.f32.partialorder %v612, 0.0
          %vm629 = vcmp.ge.f32.partialorder %v613, 0.0
          %vm630 = vcmp.ge.f32.partialorder %v614, 0.0
          %v631 = vmul.f32 %v599, 0.5
          %v632 = vmul.f32 %v600, 0.5
          %v633 = vmul.f32 %v601, 0.5
          %v634 = vmul.f32 %v602, 0.5
          %v635 = vmul.f32 %v603, 0.5
          %v636 = vmul.f32 %v604, 0.5
          %v637 = vmul.f32 %v605, 0.5
          %v638 = vmul.f32 %v606, 0.5
          %v639 = vmul.f32 %v607, 0.5
          %v640 = vmul.f32 %v608, 0.5
          %v641 = vmul.f32 %v609, 0.5
          %v642 = vmul.f32 %v610, 0.5
          %v643 = vmul.f32 %v611, 0.5
          %v644 = vmul.f32 %v612, 0.5
          %v645 = vmul.f32 %v613, 0.5
          %v646 = vmul.f32 %v614, 0.5
          %v647 = vsel %vm615, %v599, %v631
          %v648 = vsel %vm616, %v600, %v632
          %v649 = vsel %vm617, %v601, %v633
          %v650 = vsel %vm618, %v602, %v634
          %v651 = vsel %vm619, %v603, %v635
          %v652 = vsel %vm620, %v604, %v636
          %v653 = vsel %vm621, %v605, %v637
          %v654 = vsel %vm622, %v606, %v638
          %v655 = vsel %vm623, %v607, %v639
          %v656 = vsel %vm624, %v608, %v640
          %v657 = vsel %vm625, %v609, %v641
          %v658 = vsel %vm626, %v610, %v642
          %v659 = vsel %vm627, %v611, %v643
          %v660 = vsel %vm628, %v612, %v644
          %v661 = vsel %vm629, %v613, %v645
          %v662 = vsel %vm630, %v614, %v646
          %663 = vst [vmem:[%s193] sm:$0xff] %v647
          %664 = vst [vmem:[%s193 + $0x8] sm:$0xff] %v648
          %665 = vst [vmem:[%s193 + $0x10] sm:$0xff] %v649
          %666 = vst [vmem:[%s193 + $0x18] sm:$0xff] %v650
          %667 = vst [vmem:[%s193 + $0x20] sm:$0xff] %v651
          %668 = vst [vmem:[%s193 + $0x28] sm:$0xff] %v652
          %669 = vst [vmem:[%s193 + $0x30] sm:$0xff] %v653
          %670 = vst [vmem:[%s193 + $0x38] sm:$0xff] %v654
          %671 = vst [vmem:[%s193 + $0x40] sm:$0xff] %v655
          %672 = vst [vmem:[%s193 + $0x48] sm:$0xff] %v656
          %673 = vst [vmem:[%s193 + $0x50] sm:$0xff] %v657
          %674 = vst [vmem:[%s193 + $0x58] sm:$0xff] %v658
          %675 = vst [vmem:[%s193 + $0x60] sm:$0xff] %v659
          %676 = vst [vmem:[%s193 + $0x68] sm:$0xff] %v660
          %677 = vst [vmem:[%s193 + $0x70] sm:$0xff] %v661
          %678 = vst [vmem:[%s193 + $0x78] sm:$0xff] %v662
        $region48: #{tpu_custom_call.1} parent=27 // pred_fallthru
          _
        %s679 = sand.u32 %s89, 1
        %s680 = scalar_lea.sflag [#allocation4], %s679
        %s681 = sand.u32 %s89, 1
        %s682 = smul.addr %s681, 128
        %s683 = scalar_lea.vmem [#allocation7], %s682
        // Predicated region
        $region49: #{tpu_custom_call.1} parent=27 // pred_check
          %p684 = pneg %p99
        $region50: #{tpu_custom_call.1} parent=27 // pred_check_branch
          %686 = sbr.rel (%p684) target = $region52
        $region51: #{tpu_custom_call.1} parent=27 // pred_region
          %s687 = smul.u32 16, %s24
          %s689 = ssub.s32 2048, 2048
          %690 = vsyncadd %s680, %s689
          %s691 = smul.addr %s687, 128
          %s692 = scalar_lea.hbm %s2, %s691
          %s693 = sshll.u32 %s683, 4
          %s694 = int_to_ptr.vmem [resolvable:$true] %s693
          %699 = dma.vmem_to_hbm [thread:$0]  %s694, 2048, %s692, %s680, 128, 128, 8
        $region52: #{tpu_custom_call.1} parent=27 // pred_fallthru
          _
      $region28: #{tpu_custom_call.1} parent=5 // pred_fallthru
        _
      %p700 = scmp.le.s32.totalorder 2, %s15
      // Predicated region
      $region53: #{tpu_custom_call.1} parent=5 // pred_check
        %p701 = pneg %p700
      $region54: #{tpu_custom_call.1} parent=5 // pred_check_branch
        %703 = sbr.rel (%p701) target = $region56
      $region55: #{tpu_custom_call.1} parent=5 // pred_region
        %s704 = ssub.s32 %s15, 2
        // Predicated region
        $region57: #{tpu_custom_call.1} parent=55 // pred_check
          %p705 = pneg %p105
        $region58: #{tpu_custom_call.1} parent=55 // pred_check_branch
          %707 = sbr.rel (%p705) target = $region60
        $region59: #{tpu_custom_call.1} parent=55 // pred_region
          %s708 = sand.u32 %s90, 1
          %s709 = scalar_lea.sflag [#allocation4], %s708
          %s710 = sand.u32 %s90, 1
          %s711 = smul.addr %s710, 128
          %s712 = scalar_lea.vmem [#allocation7], %s711
          %713 = dma.done %s709, 2048
        $region60: #{tpu_custom_call.1} parent=55 // pred_fallthru
          _
      $region56: #{tpu_custom_call.1} parent=5 // pred_fallthru
        _
    $region6: #{tpu_custom_call.1} parent=1 // loop_footer
      %s19 = sadd.s32 1, %s15
    $region7: #{tpu_custom_call.1} parent=1 // loop_footer_branch
      %14 = sbr.rel target = $region3
    $region8: #{tpu_custom_call.1} parent=1 // loop_exit
      _
    %714 = vsyncpa [#allocation3], 1
    %s715 = scalar_lea.sflag [#allocation3], 1
    %716 = vsyncpa %s715, 1
    %717 = vsyncpa [#allocation6], 1
    %718 = vsyncpa [#allocation4], 1
    %s719 = scalar_lea.sflag [#allocation4], 1
    %720 = vsyncpa %s719, 1

</llo_original>
